<compile_context>
chip_gen: v7x
topology: tpu7x:2x2x1
jax: 0.10.0
libtpu: 0.0.40
codegen_flags: <defaults>
</compile_context>

<pallas_src>
import jax
import jax.numpy as jnp
from jax import lax
from jax.experimental import pallas as pl
from jax.experimental.pallas import tpu as pltpu


def _round_up(x, m):
    return ((x + m - 1) // m) * m


# ---------------------------------------------------------------------------
# LovaszSoftmax: per-tile kernel over the (sorted) pixel axis
# ---------------------------------------------------------------------------
def _lovasz_tile_kernel(gts_ref, err_ref, gt_ref, loss_ref, carry_ref):
    """One (C_pad, block_p) tile of the sorted pixel axis.

    gts_ref:   (C_pad, 1) total positives per class (whole image).
    err_ref:   (C_pad, T) |gt - prob|, sorted descending per class.
    gt_ref:    (C_pad, T) co-sorted {0,1} ground truth.
    loss_ref:  (C_pad, 1) per-class Lovasz loss (accumulated across tiles).
    carry_ref: (C_pad, 1) running cumsum(gt) from previous tiles.
    """
    t = pl.program_id(0)

    @pl.when(t == 0)
    def _init():
        carry_ref[...] = jnp.zeros_like(carry_ref)
        loss_ref[...] = jnp.zeros_like(loss_ref)

    err = err_ref[...]
    gt = gt_ref[...]
    gts = gts_ref[...]
    c_pad, tile = gt.shape

    lane = lax.broadcasted_iota(jnp.int32, (c_pad, tile), 1)

    # Inclusive prefix-sum of gt along lanes: Hillis-Steele log-step scan
    # (XLU roll + VPU masked add).  O(C * T * log T); no (T, T) matmul,
    # no (T, T) scratch.
    local_cum = gt
    shift = 1
    while shift < tile:
        rolled = pltpu.roll(local_cum, shift=shift, axis=1)
        local_cum = local_cum + jnp.where(lane >= shift, rolled, 0.0)
        shift *= 2

    cum_gt = carry_ref[...] + local_cum                    # global cumsum(gt)
    count = (t * tile + lane + 1).astype(jnp.float32)      # global 1-based idx
    # cumsum(1 - gt) is analytic: count - cumsum(gt)   (gt is exactly {0,1}).
    union = gts + (count - cum_gt)
    jac = 1.0 - (gts - cum_gt) * pl.reciprocal(union, approx=False)

    # Jaccard of the previous global position, computed analytically so no
    # cross-tile jaccard carry (and no roll) is needed for the finite diff.
    cum_prev = cum_gt - gt
    count_prev = count - 1.0
    union_prev = gts + (count_prev - cum_prev)
    jac_prev = 1.0 - (gts - cum_prev) * pl.reciprocal(union_prev, approx=False)
    jac_prev = jnp.where(count_prev == 0.0, 0.0, jac_prev)  # global first elem

    # loss_c += sum_i err_i * (jac_i - jac_{i-1})
    loss_ref[...] += jnp.sum(err * (jac - jac_prev), axis=1, keepdims=True)
    carry_ref[...] += jnp.sum(gt, axis=1, keepdims=True)


def _lovasz_losses_pallas(err_sorted, gt_sorted, gts, block_p):
    """err_sorted, gt_sorted: (C, P) f32 (descending by err, per class).
    gts: (C, 1) f32 per-class positive counts.  Returns (C,) losses."""
    c, p = err_sorted.shape
    c_pad = _round_up(max(c, 8), 8)
    block_p = _round_up(max(128, min(int(block_p), 2048)), 128)
    p_pad = _round_up(max(p, block_p), block_p)

    # Padded classes are all-zero (-> loss 0); padded pixels are appended
    # after the sorted suffix with err = 0, gt = 0, so they contribute 0 and
    # do not perturb any real prefix sums.
    err_p = jnp.pad(err_sorted, ((0, c_pad - c), (0, p_pad - p)))
    gt_p = jnp.pad(gt_sorted, ((0, c_pad - c), (0, p_pad - p)))
    gts_p = jnp.pad(gts, ((0, c_pad - c), (0, 0)))

    num_tiles = p_pad // block_p
    losses = pl.pallas_call(
        _lovasz_tile_kernel,
        out_shape=jax.ShapeDtypeStruct((c_pad, 1), jnp.float32),
        grid_spec=pltpu.PrefetchScalarGridSpec(
            num_scalar_prefetch=0,
            grid=(num_tiles,),
            in_specs=[
                pl.BlockSpec((c_pad, 1), lambda t: (0, 0)),
                pl.BlockSpec((c_pad, block_p), lambda t: (0, t)),
                pl.BlockSpec((c_pad, block_p), lambda t: (0, t)),
            ],
            out_specs=pl.BlockSpec((c_pad, 1), lambda t: (0, 0)),
            scratch_shapes=[
                pltpu.VMEM((c_pad, 1), jnp.float32),   # cumsum(gt) carry
            ],
        ),
        compiler_params=pltpu.CompilerParams(
            dimension_semantics=("arbitrary",),        # pixel axis = reduction
            vmem_limit_bytes=32 * 1024 * 1024,
        ),
    )(gts_p, err_p, gt_p)
    return losses[:c, 0]


def lovasz_softmax(inputs, targets, reduction="mean", block_p=512):
    """LovaszSoftmax.forward: inputs (N,C,H,W) or (N,C,D,H,W) class probs,
    targets (N,H,W) / (N,D,H,W) int labels."""
    assert inputs.ndim in (4, 5)
    num_classes = inputs.shape[1]
    # (N, C, ...) -> (C, P).  Per-class sort + cumsum are invariant to pixel
    # order, so a single class-major transpose replaces prob_flatten's NHWC
    # round-trip while keeping identical semantics.
    perm = (1, 0) + tuple(range(2, inputs.ndim))
    probs_t = jnp.transpose(inputs, perm).reshape(num_classes, -1)
    probs_t = probs_t.astype(jnp.float32)                        # (C, P)
    tgt = targets.reshape(1, -1).astype(jnp.int32)               # (1, P)

    onehot_t = (tgt == jnp.arange(num_classes, dtype=jnp.int32)[:, None])
    onehot_t = onehot_t.astype(jnp.float32)                      # (C, P)
    errors_t = jnp.abs(onehot_t - probs_t)                       # (C, P)

    # Descending co-sort of (err, gt) per class along the lane-minor axis in a
    # single pass (replaces argsort + two take_along_axis gathers).
    # TODO(synk): the sort itself stays host-side — no Pallas TPU sort primitive.
    neg_sorted, gt_sorted = lax.sort((-errors_t, onehot_t), dimension=-1,
                                     num_keys=1)
    err_sorted = -neg_sorted
    gts = jnp.sum(onehot_t, axis=1, keepdims=True)               # (C, 1)

    losses = _lovasz_losses_pallas(err_sorted, gt_sorted, gts, block_p)

    if reduction == "none":
        return losses
    if reduction == "sum":
        return jnp.sum(losses)
    return jnp.mean(losses)


# ---------------------------------------------------------------------------
# FocalLoss (reduction='mean'): elementwise + global reduction kernel
# ---------------------------------------------------------------------------
def _make_focal_kernel(num_classes, alpha, gamma, ignore_lb):
    def kernel(logit_ref, label_ref, sum_ref, cnt_ref):
        t = pl.program_id(0)

        @pl.when(t == 0)
        def _init():
            sum_ref[...] = jnp.zeros_like(sum_ref)
            cnt_ref[...] = jnp.zeros_like(cnt_ref)

        logits = logit_ref[...]                        # (C_pad, T) f32
        label = label_ref[...]                         # (1, T) i32
        c_pad, tile = logits.shape

        cls = lax.broadcasted_iota(jnp.int32, (c_pad, tile), 0)
        is_target = label == cls                       # broadcast (1,T)->(C_pad,T)
        onehot = is_target.astype(jnp.float32)

        prob = 1.0 / (1.0 + jnp.exp(-logits))          # sigmoid (EUP exp)
        pt = jnp.where(is_target, prob, 1.0 - prob)
        a = alpha * onehot + (1.0 - alpha) * (1.0 - onehot)
        loss = -a * (1.0 - pt) ** gamma * jnp.log(pt + 1e-12)

        valid_pix = label != ignore_lb                 # (1, T)
        valid = valid_pix & (cls < num_classes)        # also mask padded classes
        loss = jnp.where(valid, loss, 0.0)

        sum_ref[...] = sum_ref[...] + jnp.sum(loss)
        cnt_ref[...] = cnt_ref[...] + jnp.sum(valid_pix.astype(jnp.float32))

    return kernel


def focal_loss(logits, label, alpha=0.25, gamma=2, reduction="mean",
               ignore_lb=255, block_p=512):
    """FocalLoss.forward ('mean' path, as used by Lovasz_focal_loss)."""
    if reduction != "mean":
        # TODO(synk): non-'mean' FocalLoss returns the unreduced (N,C,H,W)
        # tensor; only the 'mean' path is implemented as a kernel.
        raise NotImplementedError("only reduction='mean' is implemented")
    assert logits.ndim == 4
    num_classes = logits.shape[1]
    lg = jnp.transpose(logits, (1, 0, 2, 3)).reshape(num_classes, -1)
    lg = lg.astype(jnp.float32)                                   # (C, P)
    lb = label.reshape(1, -1).astype(jnp.int32)                   # (1, P)
    c, p = lg.shape

    c_pad = _round_up(max(c, 8), 8)
    block_p = _round_up(max(128, min(int(block_p), 2048)), 128)
    p_pad = _round_up(max(p, block_p), block_p)

    lg_p = jnp.pad(lg, ((0, c_pad - c), (0, p_pad - p)))
    lb_p = jnp.pad(lb, ((0, 0), (0, p_pad - p)), constant_values=ignore_lb)

    num_tiles = p_pad // block_p
    loss_sum, n_valid = pl.pallas_call(
        _make_focal_kernel(num_classes, float(alpha), gamma, int(ignore_lb)),
        out_shape=(jax.ShapeDtypeStruct((1, 1), jnp.float32),
                   jax.ShapeDtypeStruct((1, 1), jnp.float32)),
        grid_spec=pltpu.PrefetchScalarGridSpec(
            num_scalar_prefetch=0,
            grid=(num_tiles,),
            in_specs=[
                pl.BlockSpec((c_pad, block_p), lambda t: (0, t)),
                pl.BlockSpec((1, block_p), lambda t: (0, t)),
            ],
            out_specs=[
                pl.BlockSpec((1, 1), lambda t: (0, 0)),
                pl.BlockSpec((1, 1), lambda t: (0, 0)),
            ],
        ),
        compiler_params=pltpu.CompilerParams(
            dimension_semantics=("arbitrary",),
            vmem_limit_bytes=32 * 1024 * 1024,
        ),
    )(lg_p, lb_p)
    return loss_sum[0, 0] / n_valid[0, 0]


# ---------------------------------------------------------------------------
# Lovasz_focal_loss.forward
# ---------------------------------------------------------------------------
def lovasz_focal_loss(inputs, targets, focal_weight=0.0, lovasz_weight=0.0,
                      alpha=0.25, gamma=2, reduction="mean", ignore_lb=255,
                      block_p=512):
    """focal_weight * FocalLoss(inputs, targets)
       + lovasz_weight * LovaszSoftmax(inputs, targets-with-ignored-set-to-0).
    (The PyTorch module mutates `targets[ignore] = 0` in-place inside
    FocalLoss before LovaszSoftmax runs; replicated explicitly here.)"""
    focal = focal_loss(inputs, targets, alpha=alpha, gamma=gamma,
                       reduction=reduction, ignore_lb=ignore_lb,
                       block_p=block_p)
    tgt_lov = jnp.where(targets == ignore_lb, 0, targets)
    lov = lovasz_softmax(inputs, tgt_lov, reduction="mean", block_p=block_p)
    return focal_weight * focal + lovasz_weight * lov


# ---------------------------------------------------------------------------
# Pure-JAX references (mirror the PyTorch module)
# ---------------------------------------------------------------------------
def _lovasz_softmax_ref(inputs, targets, reduction="mean"):
    num_classes = inputs.shape[1]
    probs = jnp.transpose(inputs, (0, 2, 3, 1)).reshape(-1, num_classes)
    probs = probs.astype(jnp.float32)
    tgt = targets.reshape(-1)
    losses = []
    for c in range(num_classes):
        target_c = (tgt == c).astype(jnp.float32)
        input_c = probs[:, c]
        loss_c = jnp.abs(target_c - input_c)
        order = jnp.argsort(-loss_c)
        loss_sorted = loss_c[order]
        gt_sorted = target_c[order]
        gts = gt_sorted.sum()
        intersection = gts - jnp.cumsum(gt_sorted)
        union = gts + jnp.cumsum(1.0 - gt_sorted)
        jac = 1.0 - intersection / union
        jac = jnp.concatenate([jac[:1], jac[1:] - jac[:-1]])
        losses.append(jnp.dot(loss_sorted, jac))
    losses = jnp.stack(losses)
    if reduction == "none":
        return losses
    if reduction == "sum":
        return losses.sum()
    return losses.mean()


def _focal_ref(logits, label, alpha=0.25, gamma=2, ignore_lb=255):
    num_classes = logits.shape[1]
    ignore = label == ignore_lb
    n_valid = jnp.sum(jnp.logical_not(ignore))
    label0 = jnp.where(ignore, 0, label)
    probs = 1.0 / (1.0 + jnp.exp(-logits.astype(jnp.float32)))
    onehot = (label0[:, None, :, :] ==
              jnp.arange(num_classes)[None, :, None, None]).astype(jnp.float32)
    pt = jnp.where(onehot == 1.0, probs, 1.0 - probs)
    a = alpha * onehot + (1.0 - alpha) * (1.0 - onehot)
    loss = -a * (1.0 - pt) ** gamma * jnp.log(pt + 1e-12)
    loss = jnp.where(ignore[:, None, :, :], 0.0, loss)
    return jnp.sum(loss) / n_valid


def _lovasz_focal_ref(inputs, targets, focal_weight, lovasz_weight,
                      alpha=0.25, gamma=2, ignore_lb=255):
    f = _focal_ref(inputs, targets, alpha, gamma, ignore_lb)
    tgt = jnp.where(targets == ignore_lb, 0, targets)
    l = _lovasz_softmax_ref(inputs, tgt, "mean")
    return focal_weight * f + lovasz_weight * l


if __name__ == "__main__":
    key = jax.random.PRNGKey(0)
    k1, k2, k3 = jax.random.split(key, 3)
    N, C, H, W = 2, 4, 16, 16
    raw = jax.random.normal(k1, (N, C, H, W), dtype=jnp.float32)
    probs = jax.nn.softmax(raw, axis=1)                  # NCHW class scores
    targets = jax.random.randint(k2, (N, H, W), 0, C, dtype=jnp.int32)
    ignore = jax.random.bernoulli(k3, 0.05, (N, H, W))
    targets = jnp.where(ignore, 255, targets).astype(jnp.int32)

    # 1) LovaszSoftmax alone, forcing multiple pixel tiles (P=512, tile=128)
    #    to exercise the cross-tile cumsum carry.
    tgt_lov = jnp.where(targets == 255, 0, targets)
    lov = jax.block_until_ready(lovasz_softmax(probs, tgt_lov, block_p=128))
    lov_ref = jax.block_until_ready(_lovasz_softmax_ref(probs, tgt_lov))
    assert jnp.isfinite(lov), "lovasz kernel produced non-finite loss"
    assert jnp.allclose(lov, lov_ref, rtol=1e-4, atol=1e-4), (lov, lov_ref)

    # 2) Full Lovasz_focal_loss forward (focal + lovasz), single-tile path.
    out = lovasz_focal_loss(probs, targets, focal_weight=0.5,
                            lovasz_weight=1.0, block_p=512)
    out = jax.block_until_ready(out)
    ref = jax.block_until_ready(_lovasz_focal_ref(probs, targets, 0.5, 1.0))
    assert jnp.isfinite(out), "combined loss is non-finite"
    assert jnp.allclose(out, ref, rtol=1e-3, atol=1e-3), (out, ref)

    print("KERNEL_OK")
</pallas_src>

<mosaic_0001>
module attributes {stable_mosaic.version = 11 : i64} {
  func.func @_lovasz_tile_kernel(%arg0: i32, %arg1: memref<8x1xf32, #tpu.memory_space<vmem>>, %arg2: memref<8x128xf32, #tpu.memory_space<vmem>>, %arg3: memref<8x128xf32, #tpu.memory_space<vmem>>, %arg4: memref<8x1xf32, #tpu.memory_space<vmem>>, %arg5: memref<8x1xf32, #tpu.memory_space<vmem>>) attributes {dimension_semantics = [#tpu.dimension_semantics<arbitrary>], iteration_bounds = array<i64: 4>, scalar_prefetch = 0 : i64, scratch_operands = 1 : i64, tpu.core_type = #tpu.core_type<tc>, window_params = [{pipeline_mode = #tpu.pipeline_mode<synchronous>, transform_indices = @transform_0, window_bounds = array<i64: 8, 1>}, {transform_indices = @transform_1, window_bounds = array<i64: 8, 128>}, {transform_indices = @transform_2, window_bounds = array<i64: 8, 128>}, {pipeline_mode = #tpu.pipeline_mode<synchronous>, transform_indices = @transform_3, window_bounds = array<i64: 8, 1>}]} {
    %c0_i32 = arith.constant 0 : i32
    %0 = arith.cmpi eq, %arg0, %c0_i32 : i32
    %1 = arith.extui %0 : i1 to i32
    %c0_i32_0 = arith.constant 0 : i32
    %2 = arith.cmpi ne, %1, %c0_i32_0 : i32
    scf.if %2 {
      %cst_37 = arith.constant 0.000000e+00 : f32
      %95 = vector.broadcast %cst_37 : f32 to vector<8x1xf32>
      %c0_38 = arith.constant 0 : index
      %c0_39 = arith.constant 0 : index
      %96 = vector.load %arg5[%c0_38, %c0_39] : memref<8x1xf32, #tpu.memory_space<vmem>>, vector<8x1xf32>
      tpu.vector_store %arg5[%c0_38, %c0_39], %95 {strides = array<i32>} : memref<8x1xf32, #tpu.memory_space<vmem>>, vector<8x1xf32>,
      %cst_40 = arith.constant 0.000000e+00 : f32
      %97 = vector.broadcast %cst_40 : f32 to vector<8x1xf32>
      %c0_41 = arith.constant 0 : index
      %c0_42 = arith.constant 0 : index
      %98 = vector.load %arg4[%c0_41, %c0_42] : memref<8x1xf32, #tpu.memory_space<vmem>>, vector<8x1xf32>
      tpu.vector_store %arg4[%c0_41, %c0_42], %97 {strides = array<i32>} : memref<8x1xf32, #tpu.memory_space<vmem>>, vector<8x1xf32>,
    } else {
    }
    %c0 = arith.constant 0 : index
    %c0_1 = arith.constant 0 : index
    %3 = vector.load %arg2[%c0, %c0_1] : memref<8x128xf32, #tpu.memory_space<vmem>>, vector<8x128xf32>
    %c0_2 = arith.constant 0 : index
    %c0_3 = arith.constant 0 : index
    %4 = vector.load %arg3[%c0_2, %c0_3] : memref<8x128xf32, #tpu.memory_space<vmem>>, vector<8x128xf32>
    %c0_4 = arith.constant 0 : index
    %c0_5 = arith.constant 0 : index
    %5 = vector.load %arg1[%c0_4, %c0_5] : memref<8x1xf32, #tpu.memory_space<vmem>>, vector<8x1xf32>
    %6 = tpu.iota {dimensions = array<i32: 1>} : vector<8x128xi32>
    %c1_i32 = arith.constant 1 : i32
    %7 = tpu.dynamic_rotate %4 by %c1_i32 dim 1 : vector<8x128xf32>, i32 -> vector<8x128xf32>
    %c1_i32_6 = arith.constant 1 : i32
    %8 = vector.broadcast %c1_i32_6 : i32 to vector<8x128xi32>
    %9 = arith.cmpi sge, %6, %8 : vector<8x128xi32>
    %cst = arith.constant 0.000000e+00 : f32
    %10 = vector.broadcast %cst : f32 to vector<8x128xf32>
    %11 = arith.select %9, %7, %10 : vector<8x128xi1>, vector<8x128xf32>
    %12 = arith.addf %4, %11 : vector<8x128xf32>
    %c2_i32 = arith.constant 2 : i32
    %13 = tpu.dynamic_rotate %12 by %c2_i32 dim 1 : vector<8x128xf32>, i32 -> vector<8x128xf32>
    %c2_i32_7 = arith.constant 2 : i32
    %14 = vector.broadcast %c2_i32_7 : i32 to vector<8x128xi32>
    %15 = arith.cmpi sge, %6, %14 : vector<8x128xi32>
    %cst_8 = arith.constant 0.000000e+00 : f32
    %16 = vector.broadcast %cst_8 : f32 to vector<8x128xf32>
    %17 = arith.select %15, %13, %16 : vector<8x128xi1>, vector<8x128xf32>
    %18 = arith.addf %12, %17 : vector<8x128xf32>
    %c4_i32 = arith.constant 4 : i32
    %19 = tpu.dynamic_rotate %18 by %c4_i32 dim 1 : vector<8x128xf32>, i32 -> vector<8x128xf32>
    %c4_i32_9 = arith.constant 4 : i32
    %20 = vector.broadcast %c4_i32_9 : i32 to vector<8x128xi32>
    %21 = arith.cmpi sge, %6, %20 : vector<8x128xi32>
    %cst_10 = arith.constant 0.000000e+00 : f32
    %22 = vector.broadcast %cst_10 : f32 to vector<8x128xf32>
    %23 = arith.select %21, %19, %22 : vector<8x128xi1>, vector<8x128xf32>
    %24 = arith.addf %18, %23 : vector<8x128xf32>
    %c8_i32 = arith.constant 8 : i32
    %25 = tpu.dynamic_rotate %24 by %c8_i32 dim 1 : vector<8x128xf32>, i32 -> vector<8x128xf32>
    %c8_i32_11 = arith.constant 8 : i32
    %26 = vector.broadcast %c8_i32_11 : i32 to vector<8x128xi32>
    %27 = arith.cmpi sge, %6, %26 : vector<8x128xi32>
    %cst_12 = arith.constant 0.000000e+00 : f32
    %28 = vector.broadcast %cst_12 : f32 to vector<8x128xf32>
    %29 = arith.select %27, %25, %28 : vector<8x128xi1>, vector<8x128xf32>
    %30 = arith.addf %24, %29 : vector<8x128xf32>
    %c16_i32 = arith.constant 16 : i32
    %31 = tpu.dynamic_rotate %30 by %c16_i32 dim 1 : vector<8x128xf32>, i32 -> vector<8x128xf32>
    %c16_i32_13 = arith.constant 16 : i32
    %32 = vector.broadcast %c16_i32_13 : i32 to vector<8x128xi32>
    %33 = arith.cmpi sge, %6, %32 : vector<8x128xi32>
    %cst_14 = arith.constant 0.000000e+00 : f32
    %34 = vector.broadcast %cst_14 : f32 to vector<8x128xf32>
    %35 = arith.select %33, %31, %34 : vector<8x128xi1>, vector<8x128xf32>
    %36 = arith.addf %30, %35 : vector<8x128xf32>
    %c32_i32 = arith.constant 32 : i32
    %37 = tpu.dynamic_rotate %36 by %c32_i32 dim 1 : vector<8x128xf32>, i32 -> vector<8x128xf32>
    %c32_i32_15 = arith.constant 32 : i32
    %38 = vector.broadcast %c32_i32_15 : i32 to vector<8x128xi32>
    %39 = arith.cmpi sge, %6, %38 : vector<8x128xi32>
    %cst_16 = arith.constant 0.000000e+00 : f32
    %40 = vector.broadcast %cst_16 : f32 to vector<8x128xf32>
    %41 = arith.select %39, %37, %40 : vector<8x128xi1>, vector<8x128xf32>
    %42 = arith.addf %36, %41 : vector<8x128xf32>
    %c64_i32 = arith.constant 64 : i32
    %43 = tpu.dynamic_rotate %42 by %c64_i32 dim 1 : vector<8x128xf32>, i32 -> vector<8x128xf32>
    %c64_i32_17 = arith.constant 64 : i32
    %44 = vector.broadcast %c64_i32_17 : i32 to vector<8x128xi32>
    %45 = arith.cmpi sge, %6, %44 : vector<8x128xi32>
    %cst_18 = arith.constant 0.000000e+00 : f32
    %46 = vector.broadcast %cst_18 : f32 to vector<8x128xf32>
    %47 = arith.select %45, %43, %46 : vector<8x128xi1>, vector<8x128xf32>
    %48 = arith.addf %42, %47 : vector<8x128xf32>
    %c0_19 = arith.constant 0 : index
    %c0_20 = arith.constant 0 : index
    %49 = vector.load %arg5[%c0_19, %c0_20] : memref<8x1xf32, #tpu.memory_space<vmem>>, vector<8x1xf32>
    %50 = vector.broadcast %49 : vector<8x1xf32> to vector<8x128xf32>
    %51 = arith.addf %50, %48 : vector<8x128xf32>
    %c128_i32 = arith.constant 128 : i32
    %52 = arith.muli %arg0, %c128_i32 : i32
    %53 = vector.broadcast %52 : i32 to vector<8x128xi32>
    %54 = arith.addi %53, %6 : vector<8x128xi32>
    %c1_i32_21 = arith.constant 1 : i32
    %55 = vector.broadcast %c1_i32_21 : i32 to vector<8x128xi32>
    %56 = arith.addi %54, %55 : vector<8x128xi32>
    %57 = arith.sitofp %56 : vector<8x128xi32> to vector<8x128xf32>
    %58 = arith.subf %57, %51 : vector<8x128xf32>
    %59 = vector.broadcast %5 : vector<8x1xf32> to vector<8x128xf32>
    %60 = arith.addf %59, %58 : vector<8x128xf32>
    %61 = vector.broadcast %5 : vector<8x1xf32> to vector<8x128xf32>
    %62 = arith.subf %61, %51 : vector<8x128xf32>
    %63 = tpu.reciprocal %60 : vector<8x128xf32> -> vector<8x128xf32>
    %64 = arith.mulf %62, %63 : vector<8x128xf32>
    %cst_22 = arith.constant 1.000000e+00 : f32
    %65 = vector.broadcast %cst_22 : f32 to vector<8x128xf32>
    %66 = arith.subf %65, %64 : vector<8x128xf32>
    %67 = arith.subf %51, %4 : vector<8x128xf32>
    %cst_23 = arith.constant 1.000000e+00 : f32
    %68 = vector.broadcast %cst_23 : f32 to vector<8x128xf32>
    %69 = arith.subf %57, %68 : vector<8x128xf32>
    %70 = arith.subf %69, %67 : vector<8x128xf32>
    %71 = vector.broadcast %5 : vector<8x1xf32> to vector<8x128xf32>
    %72 = arith.addf %71, %70 : vector<8x128xf32>
    %73 = vector.broadcast %5 : vector<8x1xf32> to vector<8x128xf32>
    %74 = arith.subf %73, %67 : vector<8x128xf32>
    %75 = tpu.reciprocal %72 : vector<8x128xf32> -> vector<8x128xf32>
    %76 = arith.mulf %74, %75 : vector<8x128xf32>
    %cst_24 = arith.constant 1.000000e+00 : f32
    %77 = vector.broadcast %cst_24 : f32 to vector<8x128xf32>
    %78 = arith.subf %77, %76 : vector<8x128xf32>
    %cst_25 = arith.constant 0.000000e+00 : f32
    %79 = vector.broadcast %cst_25 : f32 to vector<8x128xf32>
    %80 = arith.cmpf oeq, %69, %79 : vector<8x128xf32>
    %cst_26 = arith.constant 0.000000e+00 : f32
    %81 = vector.broadcast %cst_26 : f32 to vector<8x128xf32>
    %82 = arith.select %80, %81, %78 : vector<8x128xi1>, vector<8x128xf32>
    %c0_27 = arith.constant 0 : index
    %c0_28 = arith.constant 0 : index
    %83 = vector.load %arg4[%c0_27, %c0_28] : memref<8x1xf32, #tpu.memory_space<vmem>>, vector<8x1xf32>
    %84 = arith.subf %66, %82 : vector<8x128xf32>
    %85 = arith.mulf %3, %84 : vector<8x128xf32>
    %cst_29 = arith.constant dense<0.000000e+00> : vector<8xf32>
    %86 = vector.multi_reduction <add>, %85, %cst_29 [1] : vector<8x128xf32> to vector<8xf32>
    %87 = vector.shape_cast %86 : vector<8xf32> to vector<8x1xf32>
    %88 = arith.addf %83, %87 : vector<8x1xf32>
    %c0_30 = arith.constant 0 : index
    %c0_31 = arith.constant 0 : index
    %89 = vector.load %arg4[%c0_30, %c0_31] : memref<8x1xf32, #tpu.memory_space<vmem>>, vector<8x1xf32>
    tpu.vector_store %arg4[%c0_30, %c0_31], %88 {strides = array<i32>} : memref<8x1xf32, #tpu.memory_space<vmem>>, vector<8x1xf32>,
    %c0_32 = arith.constant 0 : index
    %c0_33 = arith.constant 0 : index
    %90 = vector.load %arg5[%c0_32, %c0_33] : memref<8x1xf32, #tpu.memory_space<vmem>>, vector<8x1xf32>
    %cst_34 = arith.constant dense<0.000000e+00> : vector<8xf32>
    %91 = vector.multi_reduction <add>, %4, %cst_34 [1] : vector<8x128xf32> to vector<8xf32>
    %92 = vector.shape_cast %91 : vector<8xf32> to vector<8x1xf32>
    %93 = arith.addf %90, %92 : vector<8x1xf32>
    %c0_35 = arith.constant 0 : index
    %c0_36 = arith.constant 0 : index
    %94 = vector.load %arg5[%c0_35, %c0_36] : memref<8x1xf32, #tpu.memory_space<vmem>>, vector<8x1xf32>
    tpu.vector_store %arg5[%c0_35, %c0_36], %93 {strides = array<i32>} : memref<8x1xf32, #tpu.memory_space<vmem>>, vector<8x1xf32>,
    return
  }
  func.func @transform_0(%arg0: i32) -> (i32, i32) {
    %c0_i32 = arith.constant 0 : i32
    %c0_i32_0 = arith.constant 0 : i32
    %c0_i32_1 = arith.constant 0 : i32
    return %c0_i32, %c0_i32_0 : i32, i32
  }
  func.func @transform_1(%arg0: i32) -> (i32, i32) {
    %c0_i32 = arith.constant 0 : i32
    %c0_i32_0 = arith.constant 0 : i32
    return %c0_i32, %arg0 : i32, i32
  }
  func.func @transform_2(%arg0: i32) -> (i32, i32) {
    %c0_i32 = arith.constant 0 : i32
    %c0_i32_0 = arith.constant 0 : i32
    return %c0_i32, %arg0 : i32, i32
  }
  func.func @transform_3(%arg0: i32) -> (i32, i32) {
    %c0_i32 = arith.constant 0 : i32
    %c0_i32_0 = arith.constant 0 : i32
    %c0_i32_1 = arith.constant 0 : i32
    return %c0_i32, %c0_i32_0 : i32, i32
  }
}

</mosaic_0001>

<llo_original>
// kernel: tpu_custom_call.1
$region0: #{tpu_custom_call.1}
  #allocation0 [shape = 'u32[]', space=smem, size = 0x4, offset = 0x4, fixed_abs, tag = 'smem constant byte address 0x4 - core index']
  #allocation1 [shape = 'u32[144,128]{1,0:T(1,128)}', space=vmem, size = 0x12000, scoped, tag = 'internal scratch']
  #allocation2 [shape = 'f32[8,1]{1,0:T(8,128)}', space=vmem, size = 0x1000, scoped, tag = 'scratch operand']
  %s0 = inlined_call_operand.vmem [shape: f32[8,1], index: 0, kind: input, shape index: {}]
  %s1 = inlined_call_operand.hbm [shape: f32[8,512], index: 1, kind: input, shape index: {}]
  %s2 = inlined_call_operand.hbm [shape: f32[8,512], index: 2, kind: input, shape index: {}]
  %s3 = inlined_call_operand.vmem [shape: f32[8,1], index: 3, kind: output, shape index: {}]
  %s4 = sld [smem:[#allocation0]]
  $region57: #{tpu_custom_call.1} parent=0
    _
  %s6 = ssub.s32 1, %s4
  %s7 = scalar_select 0, %s6, %s4
  $region1: #{tpu_custom_call.1} parent=0
    #allocation3 [shape = 'u8[8192]{0}', space=vmem, size = 0x2000, scoped, tag = 'input window, operand 1']
    #allocation4 [shape = 's32[2]{0}', space=sflag, size = 0x8, scoped, tag = 'scoped memory for tpu_custom_call.1']
    #allocation5 [shape = 'u8[8192]{0}', space=vmem, size = 0x2000, scoped, tag = 'input window, operand 2']
    #allocation6 [shape = 's32[2]{0}', space=sflag, size = 0x8, scoped, tag = 'scoped memory for tpu_custom_call.1']
    %8 = vsyncpa [#allocation4], 0
    %s9 = scalar_lea.sflag [#allocation4], 1
    %10 = vsyncpa %s9, 0
    %11 = vsyncpa [#allocation6], 0
    %s12 = scalar_lea.sflag [#allocation6], 1
    %13 = vsyncpa %s12, 0
    loop: start=0, step=1, limit=6
    $region2: #{tpu_custom_call.1} parent=1 // loop_pre_header
      _
    $region3: #{tpu_custom_call.1} parent=1 // loop_header
      %s15 = sphi 0, %s19
      %p16 = scmp.ge.s32.totalorder %s15, 6
      %s23 = sphi 0, %s23
      %s25 = sphi 0, %s23
      %s26 = sphi 0, %s25
      %s40 = sphi 0, %s26
      %s46 = sphi 0, %s48
      %s49 = sphi 0, %s46
      %s50 = sphi 0, %s49
      %s66 = sphi 0, %s50
      %s72 = sphi 0, %s74
      %s75 = sphi 0, %s72
      %s76 = sphi 0, %s75
      %s92 = sphi 0, %s76
      %s96 = sphi 0, %s96
      %s98 = sphi 0, %s96
      %s99 = sphi 0, %s98
      %s113 = sphi 0, %s99
    $region4: #{tpu_custom_call.1} parent=1 // loop_header_branch
      %18 = sbr.rel (%p16) target = $region8
    $region5: #{tpu_custom_call.1} parent=1 // loop_body
      %s20 = ssub.s32 %s15, 1
      %s21 = ssub.s32 %s15, 2
      %s22 = sadd.s32 %s15, 1
      %s24 = sadd.s32 %s23, 1
      %p27 = scmp.eq.s32.totalorder %s15, 3
      %p28 = scmp.ne.s32.totalorder %s23, %s25
      %p29 = scmp.eq.s32.totalorder %s15, 0
      %p30 = por %p28, %p29
      %p31 = scmp.ne.s32.totalorder %s23, %s25
      %p32 = scmp.eq.s32.totalorder %s20, 3
      %p33 = por %p31, %p32
      %p34 = scmp.ne.s32.totalorder %s25, %s26
      %p35 = scmp.eq.s32.totalorder %s20, 0
      %p36 = por %p34, %p35
      %p37 = scmp.ne.s32.totalorder %s25, %s26
      %p38 = scmp.eq.s32.totalorder %s21, 3
      %p39 = por %p37, %p38
      %p41 = scmp.ne.s32.totalorder %s26, %s40
      %p42 = scmp.eq.s32.totalorder %s21, 0
      %p43 = por %p41, %p42
      %s44 = ssub.s32 %s15, %s22
      %p45 = scmp.eq.s32.totalorder %s44, 0
      %s47 = sadd.s32 %s46, 1
      %s48 = scalar_select %p45, %s46, %s47
      %p51 = pneg %p45
      %p52 = scmp.eq.s32.totalorder %s15, 3
      %p53 = por %p51, %p52
      %p54 = scmp.ne.s32.totalorder %s46, %s49
      %p55 = scmp.eq.s32.totalorder %s15, 0
      %p56 = por %p54, %p55
      %p57 = scmp.ne.s32.totalorder %s46, %s49
      %p58 = scmp.eq.s32.totalorder %s20, 3
      %p59 = por %p57, %p58
      %p60 = scmp.ne.s32.totalorder %s49, %s50
      %p61 = scmp.eq.s32.totalorder %s20, 0
      %p62 = por %p60, %p61
      %p63 = scmp.ne.s32.totalorder %s49, %s50
      %p64 = scmp.eq.s32.totalorder %s21, 3
      %p65 = por %p63, %p64
      %p67 = scmp.ne.s32.totalorder %s50, %s66
      %p68 = scmp.eq.s32.totalorder %s21, 0
      %p69 = por %p67, %p68
      %s70 = ssub.s32 %s15, %s22
      %p71 = scmp.eq.s32.totalorder %s70, 0
      %s73 = sadd.s32 %s72, 1
      %s74 = scalar_select %p71, %s72, %s73
      %p77 = pneg %p71
      %p78 = scmp.eq.s32.totalorder %s15, 3
      %p79 = por %p77, %p78
      %p80 = scmp.ne.s32.totalorder %s72, %s75
      %p81 = scmp.eq.s32.totalorder %s15, 0
      %p82 = por %p80, %p81
      %p83 = scmp.ne.s32.totalorder %s72, %s75
      %p84 = scmp.eq.s32.totalorder %s20, 3
      %p85 = por %p83, %p84
      %p86 = scmp.ne.s32.totalorder %s75, %s76
      %p87 = scmp.eq.s32.totalorder %s20, 0
      %p88 = por %p86, %p87
      %p89 = scmp.ne.s32.totalorder %s75, %s76
      %p90 = scmp.eq.s32.totalorder %s21, 3
      %p91 = por %p89, %p90
      %p93 = scmp.ne.s32.totalorder %s76, %s92
      %p94 = scmp.eq.s32.totalorder %s21, 0
      %p95 = por %p93, %p94
      %s97 = sadd.s32 %s96, 1
      %p100 = scmp.eq.s32.totalorder %s15, 3
      %p101 = scmp.ne.s32.totalorder %s96, %s98
      %p102 = scmp.eq.s32.totalorder %s15, 0
      %p103 = por %p101, %p102
      %p104 = scmp.ne.s32.totalorder %s96, %s98
      %p105 = scmp.eq.s32.totalorder %s20, 3
      %p106 = por %p104, %p105
      %p107 = scmp.ne.s32.totalorder %s98, %s99
      %p108 = scmp.eq.s32.totalorder %s20, 0
      %p109 = por %p107, %p108
      %p110 = scmp.ne.s32.totalorder %s98, %s99
      %p111 = scmp.eq.s32.totalorder %s21, 3
      %p112 = por %p110, %p111
      %p114 = scmp.ne.s32.totalorder %s99, %s113
      %p115 = scmp.eq.s32.totalorder %s21, 0
      %p116 = por %p114, %p115
      %p117 = scmp.le.s32.totalorder 1, %s15
      %p118 = scmp.lt.s32.totalorder %s15, 5
      %p119 = pnand %p117, %p118
      %p120 = pneg %p119
      // Predicated region
      $region9: #{tpu_custom_call.1} parent=5 // pred_check
        _
      $region10: #{tpu_custom_call.1} parent=5 // pred_check_branch
        %122 = sbr.rel (%p119) target = $region12
      $region11: #{tpu_custom_call.1} parent=5 // pred_region
        %s123 = ssub.s32 %s15, 1
        // Predicated region
        $region13: #{tpu_custom_call.1} parent=11 // pred_check
          %p124 = pneg %p36
        $region14: #{tpu_custom_call.1} parent=11 // pred_check_branch
          %126 = sbr.rel (%p124) target = $region16
        $region15: #{tpu_custom_call.1} parent=11 // pred_region
          _
        $region16: #{tpu_custom_call.1} parent=11 // pred_fallthru
          _
      $region12: #{tpu_custom_call.1} parent=5 // pred_fallthru
        _
      %p127 = scmp.lt.s32.totalorder %s15, 4
      // Predicated region
      $region17: #{tpu_custom_call.1} parent=5 // pred_check
        %p128 = pneg %p127
      $region18: #{tpu_custom_call.1} parent=5 // pred_check_branch
        %130 = sbr.rel (%p128) target = $region20
      $region19: #{tpu_custom_call.1} parent=5 // pred_region
        // Predicated region
        $region21: #{tpu_custom_call.1} parent=19 // pred_check
          %p131 = pneg %p56
        $region22: #{tpu_custom_call.1} parent=19 // pred_check_branch
          %133 = sbr.rel (%p131) target = $region24
        $region23: #{tpu_custom_call.1} parent=19 // pred_region
          %s134 = sand.u32 %s46, 1
          %s135 = scalar_lea.sflag [#allocation4], %s134
          %s136 = sand.u32 %s46, 1
          %s137 = smul.addr %s136, 8
          %s138 = scalar_lea.vmem [#allocation3], %s137
          %s140 = ssub.s32 128, 128
          %141 = vsyncadd %s135, %s140
          %s142 = smul.addr %s15, 128
          %s143 = scalar_lea.hbm %s1, %s142
          %s145 = sshll.u32 %s138, 4
          %s146 = int_to_ptr.vmem [resolvable:$true] %s145
          %148 = dma.hbm_to_vmem [thread:$0]  %s143, 128, %s146, %s135
        $region24: #{tpu_custom_call.1} parent=19 // pred_fallthru
          _
        // Predicated region
        $region25: #{tpu_custom_call.1} parent=19 // pred_check
          %p149 = pneg %p82
        $region26: #{tpu_custom_call.1} parent=19 // pred_check_branch
          %151 = sbr.rel (%p149) target = $region28
        $region27: #{tpu_custom_call.1} parent=19 // pred_region
          %s152 = sand.u32 %s72, 1
          %s153 = scalar_lea.sflag [#allocation6], %s152
          %s154 = sand.u32 %s72, 1
          %s155 = smul.addr %s154, 8
          %s156 = scalar_lea.vmem [#allocation5], %s155
          %s158 = ssub.s32 128, 128
          %159 = vsyncadd %s153, %s158
          %s160 = smul.addr %s15, 128
          %s161 = scalar_lea.hbm %s2, %s160
          %s163 = sshll.u32 %s156, 4
          %s164 = int_to_ptr.vmem [resolvable:$true] %s163
          %166 = dma.hbm_to_vmem [thread:$0]  %s161, 128, %s164, %s153
        $region28: #{tpu_custom_call.1} parent=19 // pred_fallthru
          _
      $region20: #{tpu_custom_call.1} parent=5 // pred_fallthru
        _
      %p167 = scmp.le.s32.totalorder 1, %s15
      %p168 = scmp.lt.s32.totalorder %s15, 5
      %p169 = pnand %p167, %p168
      %p170 = pneg %p169
      // Predicated region
      $region29: #{tpu_custom_call.1} parent=5 // pred_check
        _
      $region30: #{tpu_custom_call.1} parent=5 // pred_check_branch
        %172 = sbr.rel (%p169) target = $region32
      $region31: #{tpu_custom_call.1} parent=5 // pred_region
        %s173 = ssub.s32 %s15, 1
        %s174 = sand.u32 %s49, 1
        %s175 = scalar_lea.sflag [#allocation4], %s174
        %s176 = sand.u32 %s49, 1
        %s177 = smul.addr %s176, 8
        %s178 = scalar_lea.vmem [#allocation3], %s177
        // Predicated region
        $region33: #{tpu_custom_call.1} parent=31 // pred_check
          %p179 = pneg %p62
        $region34: #{tpu_custom_call.1} parent=31 // pred_check_branch
          %181 = sbr.rel (%p179) target = $region36
        $region35: #{tpu_custom_call.1} parent=31 // pred_region
          %182 = dma.done %s175, 128
        $region36: #{tpu_custom_call.1} parent=31 // pred_fallthru
          _
        %s183 = sand.u32 %s75, 1
        %s184 = scalar_lea.sflag [#allocation6], %s183
        %s185 = sand.u32 %s75, 1
        %s186 = smul.addr %s185, 8
        %s187 = scalar_lea.vmem [#allocation5], %s186
        // Predicated region
        $region37: #{tpu_custom_call.1} parent=31 // pred_check
          %p188 = pneg %p88
        $region38: #{tpu_custom_call.1} parent=31 // pred_check_branch
          %190 = sbr.rel (%p188) target = $region40
        $region39: #{tpu_custom_call.1} parent=31 // pred_region
          %191 = dma.done %s184, 128
        $region40: #{tpu_custom_call.1} parent=31 // pred_fallthru
          _
        %p192 = pneg %p36
        %p193 = pneg %p33
        %s194 = sand.u32 %s49, 1
        %s195 = scalar_lea.sflag [#allocation4], %s194
        %s196 = sand.u32 %s49, 1
        %s197 = smul.addr %s196, 8
        %s198 = scalar_lea.vmem [#allocation3], %s197
        %p199 = pneg %p62
        %p200 = pneg %p59
        %s201 = sand.u32 %s75, 1
        %s202 = scalar_lea.sflag [#allocation6], %s201
        %s203 = sand.u32 %s75, 1
        %s204 = smul.addr %s203, 8
        %s205 = scalar_lea.vmem [#allocation5], %s204
        %p206 = pneg %p88
        %p207 = pneg %p85
        %p208 = pneg %p109
        %p209 = pneg %p106
        %p210 = scmp.eq.s32.totalorder %s20, 0
        // Predicated region
        $region41: #{tpu_custom_call.1} parent=31 // pred_check
          %p211 = pneg %p210
        $region42: #{tpu_custom_call.1} parent=31 // pred_check_branch
          %213 = sbr.rel (%p211) target = $region44
        $region43: #{tpu_custom_call.1} parent=31 // pred_region
          %vm214 = vcmask 7168
          %215 = vst.msk [vmem:[#allocation2] sm:$0xff] %vm214, 0.0
          %216 = vst.msk [vmem:[%s3] sm:$0xff] %vm214, 0.0
        $region44: #{tpu_custom_call.1} parent=31 // pred_fallthru
          _
        %v217 = vld [vmem:[%s178] sm:$0xff]
        %v218 = vld [vmem:[%s187] sm:$0xff]
        %v219 = vld [vmem:[%s0] sm:$0xff]
        %v220 = vlaneseq
        %v221 = vand.u32 %v220, 127
        %222 = vrot.lane.b32.xlu0 %v218, 1
        %v223 = vpop.permute.xlu0 %222
        %vm224 = vcmp.ge.s32.totalorder %v221, 1
        %v225 = vsel %vm224, %v223, 0.0
        %v226 = vadd.f32 %v218, %v225
        %227 = vrot.lane.b32.xlu0 %v226, 2
        %v228 = vpop.permute.xlu0 %227
        %vm229 = vcmp.ge.s32.totalorder %v221, 2
        %v230 = vsel %vm229, %v228, 0.0
        %v231 = vadd.f32 %v226, %v230
        %232 = vrot.lane.b32.xlu0 %v231, 4
        %v233 = vpop.permute.xlu0 %232
        %vm234 = vcmp.ge.s32.totalorder %v221, 4
        %v235 = vsel %vm234, %v233, 0.0
        %v236 = vadd.f32 %v231, %v235
        %237 = vrot.lane.b32.xlu0 %v236, 8
        %v238 = vpop.permute.xlu0 %237
        %vm239 = vcmp.ge.s32.totalorder %v221, 8
        %v240 = vsel %vm239, %v238, 0.0
        %v241 = vadd.f32 %v236, %v240
        %242 = vrot.lane.b32.xlu0 %v241, 16
        %v243 = vpop.permute.xlu0 %242
        %vm244 = vcmp.ge.s32.totalorder %v221, 16
        %v245 = vsel %vm244, %v243, 0.0
        %v246 = vadd.f32 %v241, %v245
        %247 = vrot.lane.b32.xlu0 %v246, 32
        %v248 = vpop.permute.xlu0 %247
        %vm249 = vcmp.ge.s32.totalorder %v221, 32
        %v250 = vsel %vm249, %v248, 0.0
        %v251 = vadd.f32 %v246, %v250
        %252 = vrot.lane.b32.xlu0 %v251, 64
        %v253 = vpop.permute.xlu0 %252
        %vm254 = vcmp.ge.s32.totalorder %v221, 64
        %v255 = vsel %vm254, %v253, 0.0
        %v256 = vadd.f32 %v251, %v255
        %v257 = vld [vmem:[#allocation2] sm:$0xff]
        %259 = vset.pattern.permute.xlu0 0
        %260 = vperm.xlu0 %259, %v257
        %v261 = vpop.permute.xlu0 %260
        %v263 = vadd.f32 %v261, %v256
        %s264 = smul.u32 %s20, 128
        %v265 = vstv %s264
        %v266 = vadd.s32 %v265, %v221
        %v267 = vadd.s32 %v266, 1
        %v268 = vcvt.s32.f32 %v267
        %v269 = vsub.f32 %v268, %v263
        %271 = vset.pattern.permute.xlu0 0
        %272 = vperm.xlu0 %271, %v219
        %v273 = vpop.permute.xlu0 %272
        %v275 = vadd.f32 %v273, %v269
        %v276 = vsub.f32 %v273, %v263
        %v277 = vrcp.pop %v275
        %v278 = vmul.f32 %v276, %v277
        %v279 = vsub.f32 1.0, %v278
        %v280 = vsub.f32 %v263, %v218
        %v281 = vsub.f32 %v268, 1.0
        %v282 = vsub.f32 %v281, %v280
        %v283 = vadd.f32 %v273, %v282
        %v284 = vsub.f32 %v273, %v280
        %v285 = vrcp.pop %v283
        %v286 = vmul.f32 %v284, %v285
        %v287 = vsub.f32 1.0, %v286
        %vm288 = vcmp.eq.f32.partialorder %v281, 0.0
        %v289 = vsel %vm288, 0.0, %v287
        %v290 = vld [vmem:[%s3] sm:$0xff]
        %v291 = vsub.f32 %v279, %v289
        %v292 = vmul.f32 %v217, %v291
        %293 = vadd.xlane.f32.xlu0 %v292
        %v294 = vpop.xlane.xlu0 %293
        %v295 = vadd.f32 %v290, %v294
        %vm296 = vcmask 7168
        %297 = vst.msk [vmem:[%s3] sm:$0xff] %vm296, %v295
        %v298 = vld [vmem:[#allocation2] sm:$0xff]
        %299 = vadd.xlane.f32.xlu0 %v218
        %v300 = vpop.xlane.xlu0 %299
        %v301 = vadd.f32 %v298, %v300
        %302 = vst.msk [vmem:[#allocation2] sm:$0xff] %vm296, %v301
        // Predicated region
        $region45: #{tpu_custom_call.1} parent=31 // pred_check
          %p303 = pneg %p106
        $region46: #{tpu_custom_call.1} parent=31 // pred_check_branch
          %305 = sbr.rel (%p303) target = $region48
        $region47: #{tpu_custom_call.1} parent=31 // pred_region
          _
        $region48: #{tpu_custom_call.1} parent=31 // pred_fallthru
          _
        // Predicated region
        $region49: #{tpu_custom_call.1} parent=31 // pred_check
          %p306 = pneg %p106
        $region50: #{tpu_custom_call.1} parent=31 // pred_check_branch
          %308 = sbr.rel (%p306) target = $region52
        $region51: #{tpu_custom_call.1} parent=31 // pred_region
          _
        $region52: #{tpu_custom_call.1} parent=31 // pred_fallthru
          _
      $region32: #{tpu_custom_call.1} parent=5 // pred_fallthru
        _
      %p309 = scmp.le.s32.totalorder 2, %s15
      // Predicated region
      $region53: #{tpu_custom_call.1} parent=5 // pred_check
        %p310 = pneg %p309
      $region54: #{tpu_custom_call.1} parent=5 // pred_check_branch
        %312 = sbr.rel (%p310) target = $region56
      $region55: #{tpu_custom_call.1} parent=5 // pred_region
        %s313 = ssub.s32 %s15, 2
      $region56: #{tpu_custom_call.1} parent=5 // pred_fallthru
        _
    $region6: #{tpu_custom_call.1} parent=1 // loop_footer
      %s19 = sadd.s32 1, %s15
    $region7: #{tpu_custom_call.1} parent=1 // loop_footer_branch
      %14 = sbr.rel target = $region3
    $region8: #{tpu_custom_call.1} parent=1 // loop_exit
      _
    %314 = vsyncpa [#allocation4], 1
    %s315 = scalar_lea.sflag [#allocation4], 1
    %316 = vsyncpa %s315, 1
    %317 = vsyncpa [#allocation6], 1
    %s318 = scalar_lea.sflag [#allocation6], 1
    %319 = vsyncpa %s318, 1

</llo_original>
